<compile_context>
chip_gen: v7x
topology: tpu7x:2x2x1
jax: 0.10.0
libtpu: 0.0.40
codegen_flags: <defaults>
</compile_context>

<pallas_src>
import jax
import jax.numpy as jnp
from jax.experimental import pallas as pl
from jax.experimental.pallas import tpu as pltpu


def _copy_kernel(x_ref, o_ref):
    # Element-order-preserving copy; the only "work" of a materialized view.
    o_ref[...] = x_ref[...]


def _pallas_materialize_copy(flat):
    """Copy a flat (length % 128 == 0) buffer through a Pallas identity kernel.

    Returns a new flat array with identical element order, or None if the
    length cannot be mapped onto a lane-dense slab (caller then falls back).
    """
    total = flat.shape[0]
    itemsize = flat.dtype.itemsize

    # Widest lane-dense last dim (multiple of 128) that divides the length.
    lanes = None
    for cand in (4096, 2048, 1024, 512, 256, 128):
        if total % cand == 0:
            lanes = cand
            break
    if lanes is None:
        return None
    rows = total // lanes
    slab = jnp.reshape(flat, (rows, lanes))

    # ~2 MiB blocks: in+out double-buffered => 4 x 2 MiB = 8 MiB of VMEM,
    # safe on v5e/v6e/v7x, and already at the measured ~85% roofline plateau.
    block_budget_bytes = 2 * 1024 * 1024
    max_rows = max(8, block_budget_bytes // (lanes * itemsize))
    if rows <= max_rows:
        tile_rows = rows                       # single block == full array dims
    else:
        tile_rows = (max_rows // 8) * 8        # sublane-aligned tile
    grid = (pl.cdiv(rows, tile_rows),)         # ragged last block is masked

    out2d = pl.pallas_call(
        _copy_kernel,
        out_shape=jax.ShapeDtypeStruct((rows, lanes), flat.dtype),
        grid_spec=pltpu.PrefetchScalarGridSpec(
            num_scalar_prefetch=0,
            grid=grid,
            in_specs=[pl.BlockSpec((tile_rows, lanes), lambda i: (i, 0))],
            out_specs=pl.BlockSpec((tile_rows, lanes), lambda i: (i, 0)),
        ),
        compiler_params=pltpu.CompilerParams(
            dimension_semantics=("parallel",),
            vmem_limit_bytes=32 * 1024 * 1024,
        ),
        cost_estimate=pl.CostEstimate(
            flops=0,
            transcendentals=0,
            bytes_accessed=2 * total * itemsize,
        ),
    )(slab)
    return jnp.reshape(out2d, (-1,))


def _resolve_shape(total, shape):
    """Resolve a torch.view-style target shape (supports a single -1)."""
    shape = list(shape)
    assert shape.count(-1) <= 1, "only one -1 allowed in view shape"
    if -1 in shape:
        idx = shape.index(-1)
        known = 1
        for j, s in enumerate(shape):
            if j != idx:
                known *= s
        assert known != 0 and total % known == 0, "invalid shape for view"
        shape[idx] = total // known
    prod = 1
    for s in shape:
        prod *= s
    assert prod == total, "shape is invalid for input size"
    return tuple(shape)


def reshape_forward(x, shape, materialize=False):
    """Equivalent of torch.Tensor.view(shape).

    Default path is metadata-only (no data movement, no kernel) — the correct
    and fastest implementation of a view.  Pass materialize=True to force an
    explicit HBM copy through the Pallas identity kernel.
    """
    target = _resolve_shape(x.size, shape)

    if not materialize:
        # A view is layout metadata; emitting a copy kernel here only burns
        # 2*N bytes of HBM bandwidth.  This is the hot path.
        return jnp.reshape(x, target)

    flat = jnp.reshape(x, (-1,))
    if x.size % 128 == 0:
        copied = _pallas_materialize_copy(flat)
        if copied is not None:
            flat = copied
    # TODO(synk): lengths not divisible by 128 have no clean lane-dense slab;
    # the materialized path falls back to the metadata-only reshape there.
    return jnp.reshape(flat, target)


if __name__ == "__main__":
    key = jax.random.PRNGKey(0)

    # Mirror: Reshape(2, 4, 256) applied to x of shape (2, 4, 16, 16).
    x = jax.random.normal(key, (2, 4, 16, 16), dtype=jnp.float32)
    target_shape = (2, 4, 256)
    ref = jnp.reshape(x, target_shape)

    # 1) Default (metadata-only) path — the recommended implementation.
    out_meta = jax.block_until_ready(reshape_forward(x, target_shape))
    assert out_meta.shape == ref.shape and out_meta.dtype == ref.dtype
    assert bool(jnp.all(out_meta == ref))

    # 2) Explicit materializing path — exercises the Pallas copy kernel once.
    out_mat = jax.block_until_ready(
        reshape_forward(x, target_shape, materialize=True))
    assert out_mat.shape == ref.shape and out_mat.dtype == ref.dtype
    assert bool(jnp.all(out_mat == ref))

    # 3) Small extra case with a -1 dim and a lane width of exactly 128.
    x2 = jax.random.normal(jax.random.PRNGKey(1), (3, 5, 128), dtype=jnp.float32)
    ref2 = jnp.reshape(x2, (15, 128))
    out2 = jax.block_until_ready(reshape_forward(x2, (-1, 128), materialize=True))
    assert out2.shape == ref2.shape and bool(jnp.all(out2 == ref2))

    print("KERNEL_OK")
</pallas_src>

<mosaic_0001>
module attributes {stable_mosaic.version = 11 : i64} {
  func.func @_copy_kernel(%arg0: i32, %arg1: memref<1x2048xf32, #tpu.memory_space<vmem>>, %arg2: memref<1x2048xf32, #tpu.memory_space<vmem>>) attributes {dimension_semantics = [#tpu.dimension_semantics<parallel>], iteration_bounds = array<i64: 1>, scalar_prefetch = 0 : i64, scratch_operands = 0 : i64, tpu.core_type = #tpu.core_type<tc>, window_params = [{transform_indices = @transform_0, window_bounds = array<i64: 1, 2048>}, {transform_indices = @transform_1, window_bounds = array<i64: 1, 2048>}]} {
    %c0 = arith.constant 0 : index
    %c0_0 = arith.constant 0 : index
    %0 = vector.load %arg1[%c0, %c0_0] : memref<1x2048xf32, #tpu.memory_space<vmem>>, vector<1x2048xf32>
    %c0_1 = arith.constant 0 : index
    %c0_2 = arith.constant 0 : index
    %1 = vector.load %arg2[%c0_1, %c0_2] : memref<1x2048xf32, #tpu.memory_space<vmem>>, vector<1x2048xf32>
    tpu.vector_store %arg2[%c0_1, %c0_2], %0 {strides = array<i32>} : memref<1x2048xf32, #tpu.memory_space<vmem>>, vector<1x2048xf32>,
    return
  }
  func.func @transform_0(%arg0: i32) -> (i32, i32) {
    %c0_i32 = arith.constant 0 : i32
    %c0_i32_0 = arith.constant 0 : i32
    return %arg0, %c0_i32 : i32, i32
  }
  func.func @transform_1(%arg0: i32) -> (i32, i32) {
    %c0_i32 = arith.constant 0 : i32
    %c0_i32_0 = arith.constant 0 : i32
    return %arg0, %c0_i32 : i32, i32
  }
}

</mosaic_0001>

<llo_original>
// kernel: tpu_custom_call.1
$region0: #{tpu_custom_call.1}
  #allocation0 [shape = 'u32[]', space=smem, size = 0x4, offset = 0x4, fixed_abs, tag = 'smem constant byte address 0x4 - core index']
  #allocation1 [shape = 'u32[144,128]{1,0:T(1,128)}', space=vmem, size = 0x12000, scoped, tag = 'internal scratch']
  %s0 = inlined_call_operand.hbm [shape: f32[1,2048], index: 0, kind: input, shape index: {}]
  %s1 = inlined_call_operand.hbm [shape: f32[1,2048], index: 1, kind: output, shape index: {}]
  %s2 = sld [smem:[#allocation0]]
  $region18: #{tpu_custom_call.1} parent=0
    _
  %s4 = ssub.s32 1, %s2
  %s5 = scalar_select 0, %s4, %s2
  $region1: #{tpu_custom_call.1} parent=0
    #allocation2 [shape = 'u8[8192]{0}', space=vmem, size = 0x2000, scoped, tag = 'input window, operand 0, single buffered']
    #allocation3 [shape = 's32[1]{0}', space=sflag, size = 0x4, scoped, tag = 'scoped memory for tpu_custom_call.1']
    #allocation4 [shape = 's32[1]{0}', space=sflag, size = 0x4, scoped, tag = 'scoped memory for tpu_custom_call.1']
    #allocation5 [shape = 'u8[8192]{0}', space=vmem, size = 0x2000, scoped, tag = 'output window, operand 0, single buffered']
    %6 = vsyncpa [#allocation3], 0
    %7 = vsyncpa [#allocation4], 0
    // Predicated region
    $region2: #{tpu_custom_call.1} parent=1 // pred_check
      _
    $region3: #{tpu_custom_call.1} parent=1 // pred_check_branch
      %9 = sbr.rel (0) target = $region5
    $region4: #{tpu_custom_call.1} parent=1 // pred_region
      %s11 = ssub.s32 256, 256
      %12 = vsyncadd [#allocation3], %s11
      %s14 = sshll.u32 [#allocation2], 4
      %s15 = int_to_ptr.vmem [resolvable:$true] %s14
      %17 = dma.hbm_to_vmem [thread:$0]  %s0, 256, %s15, [#allocation3]
    $region5: #{tpu_custom_call.1} parent=1 // pred_fallthru
      _
    // Predicated region
    $region6: #{tpu_custom_call.1} parent=1 // pred_check
      _
    $region7: #{tpu_custom_call.1} parent=1 // pred_check_branch
      %19 = sbr.rel (0) target = $region9
    $region8: #{tpu_custom_call.1} parent=1 // pred_region
      %20 = dma.done [#allocation3], 256
    $region9: #{tpu_custom_call.1} parent=1 // pred_fallthru
      _
    %v21 = vld [vmem:[#allocation2] sm:$0xff]
    %v22 = vld [vmem:[#allocation2 + $0x8] sm:$0xff]
    %23 = vst [vmem:[#allocation5] sm:$0xff] %v21
    %24 = vst [vmem:[#allocation5 + $0x8] sm:$0xff] %v22
    // Predicated region
    $region10: #{tpu_custom_call.1} parent=1 // pred_check
      _
    $region11: #{tpu_custom_call.1} parent=1 // pred_check_branch
      %26 = sbr.rel (0) target = $region13
    $region12: #{tpu_custom_call.1} parent=1 // pred_region
      %s28 = ssub.s32 256, 256
      %29 = vsyncadd [#allocation4], %s28
      %s31 = sshll.u32 [#allocation5], 4
      %s32 = int_to_ptr.vmem [resolvable:$true] %s31
      %34 = dma.vmem_to_hbm [thread:$0]  %s32, 256, %s1, [#allocation4]
    $region13: #{tpu_custom_call.1} parent=1 // pred_fallthru
      _
    // Predicated region
    $region14: #{tpu_custom_call.1} parent=1 // pred_check
      _
    $region15: #{tpu_custom_call.1} parent=1 // pred_check_branch
      %36 = sbr.rel (0) target = $region17
    $region16: #{tpu_custom_call.1} parent=1 // pred_region
      %37 = dma.done [#allocation4], 256
    $region17: #{tpu_custom_call.1} parent=1 // pred_fallthru
      _
    %38 = vsyncpa [#allocation3], 1
    %39 = vsyncpa [#allocation4], 1

</llo_original>
